<compile_context>
chip_gen: v7x
topology: tpu7x:2x2x1
jax: 0.10.0
libtpu: 0.0.40
codegen_flags: <defaults>
</compile_context>

<pallas_src>
import functools

import jax
import jax.numpy as jnp
from jax.experimental import pallas as pl
from jax.experimental.pallas import tpu as pltpu


def _finite_or_zero(v):
    # |v| < inf is False for NaN and +/-Inf -> single compare + select scrub.
    return jnp.where(jnp.abs(v) < jnp.float32(jnp.inf), v, jnp.zeros_like(v))


def _mlr_kernel(c_ref, x_ref, w_ref, scale_ref, o_ref, xsq_ref, *,
                hoist_cx2, scrub_mm):
    """One (row-tile, outcome-tile) block of the Poincare MLR.

    c_ref     : (1, 1) SMEM   c = rc*rc   (rc = sqrt(c) clamped >= 1e-15)
    x_ref     : (tm, D)       input points (flattened batch dims, caller dtype)
    w_ref     : (D, tn)       RAW weight_v tile (bf16 by default; 1/||v|| is
                              folded into scale_ref row 0)
    scale_ref : (3, tn) f32   [2*rc*cosh(drcr)/||v|| ; sinh(drcr) ; 2*z_norm/rc]
    o_ref     : (tm, tn)      output logits
    xsq_ref   : (tm, 1) f32   scratch: sum(x*x) hoisted across the j axis
    """
    c_val = c_ref[0, 0]                                         # scalar f32

    x = x_ref[...]                                              # (tm, D)
    x_mxu = x if x.dtype == w_ref.dtype else x.astype(w_ref.dtype)

    def _row_sumsq():
        xf = x.astype(jnp.float32)
        return jnp.sum(xf * xf, axis=-1, keepdims=True)         # (tm, 1)

    if hoist_cx2:
        # j is the innermost ("arbitrary") grid axis; compute once per row tile.
        @pl.when(pl.program_id(1) == 0)
        def _():
            xsq_ref[...] = _row_sumsq()
        xsq = xsq_ref[...]
    else:
        xsq = _row_sumsq()

    # cx2 = ||rc*x||^2 = c * ||x||^2, clamped to [0, 1e15]
    cx2 = jnp.clip(c_val * xsq, 0.0, 1.0e15)                    # (tm, 1)

    mm = jnp.dot(x_mxu, w_ref[...], preferred_element_type=jnp.float32)
    if scrub_mm:
        # NOTE: scrub applied to the un-normalized product x @ weight_v (the
        # 1/||v|| factor lives in scale row 0); equivalent in practice to the
        # torch scrub on the normalized matmul.
        mm = _finite_or_zero(mm)

    coshs = scale_ref[0:1, :]        # 2*rc*cosh(drcr)/||v||
    sinhv = scale_ref[1:2, :]        # sinh(drcr)
    zns = scale_ref[2:3, :]          # 2*z_norm/rc

    # numerator = 2*(rc*mm_norm)*cosh - (1+cx2)*sinh ; rc and 1/||v|| pre-folded.
    numerator = mm * coshs - (1.0 + cx2) * sinhv                # (tm, tn)
    inv_den = pl.reciprocal(jnp.maximum(1.0 - cx2, 1e-15), approx=False)
    t = numerator * inv_den                                     # (tm, tn)

    # arsinh(clip(t, +/-1e5)) = sign(t) * log(|t|_clamped + sqrt(.^2 + 1))
    a = jnp.minimum(jnp.abs(t), 1.0e5)
    asinh_abs = jnp.log(a + jnp.sqrt(a * a + 1.0))
    res = zns * asinh_abs
    res = jnp.where(t < 0.0, -res, res)
    res = _finite_or_zero(res)
    o_ref[...] = res.astype(o_ref.dtype)


def _vmem_capacity_bytes():
    try:
        info = pltpu.get_tpu_info()
        cap = getattr(info, "vmem_capacity_bytes", None)
        if cap:
            return int(cap)
    except Exception:
        pass
    return 64 * 1024 * 1024  # conservative: v7x per-TC VMEM


def _select_tiles(n, d, k, x_bytes, w_bytes, out_bytes, tile_budget):
    """Pick (tm, tn) so the double-buffered working set fits tile_budget."""
    tn = k if k <= 512 else 512

    def ws(tm_, tn_):
        # double-buffered x tile + weight tile + output tile, plus small bits
        return (2 * (tm_ * d * x_bytes + d * tn_ * w_bytes + tm_ * tn_ * out_bytes)
                + tm_ * 4 + 2 * 8 * tn_ * 4)

    # Only shrink tn when it is a 128-multiple (keeps the lane-tiling rule).
    while tn % 128 == 0 and tn > 128 and ws(8, tn) > tile_budget:
        tn //= 2

    n8 = ((n + 7) // 8) * 8
    cap = min(1024, n8)
    tm = min(8, cap) if cap >= 8 else 8
    for cand in (16, 32, 64, 128, 256, 512, 1024):
        if cand > cap:
            break
        if ws(cand, tn) <= tile_budget:
            tm = cand
    return tm, tn


def poincare_mlr_pallas(x, weight_g, weight_v, bias, c, *,
                        weight_dtype=jnp.bfloat16, out_dtype=None,
                        tm=None, tn=None, scrub_mm=True, interpret=False):
    """x: (..., feat_dim) -> (..., num_outcome). Forward of UnidirectionalPoincareMLR."""
    feat_dim, num_outcome = weight_v.shape
    orig_shape = x.shape
    assert orig_shape[-1] == feat_dim
    out_dtype = x.dtype if out_dtype is None else jnp.dtype(out_dtype)

    # ---- one-time parameter glue (module.forward preamble), stays on-device ----
    c_arr = jnp.asarray(c, jnp.float32).reshape(())
    rc = jnp.maximum(jnp.sqrt(c_arr), 1e-15)
    v_norm = jnp.maximum(jnp.linalg.norm(weight_v.astype(jnp.float32), axis=0), 1e-15)
    drcr = jnp.clip(2.0 * rc * bias.astype(jnp.float32), -20.0, 20.0)
    # Packed (3, K) scale table; 1/||v|| folded into the cosh row so the raw
    # weight_v is streamed to the MXU with no normalized copy materialized.
    scales = jnp.stack([
        2.0 * rc * jnp.cosh(drcr) / v_norm,
        jnp.sinh(drcr),
        2.0 * weight_g.astype(jnp.float32) / rc,
    ], axis=0)
    c_smem = (rc * rc).reshape(1, 1)
    w = weight_v if weight_v.dtype == jnp.dtype(weight_dtype) else weight_v.astype(weight_dtype)
    # TODO(synk): on v7x an fp8 weight path would halve the weight stream again;
    # not enabled here for accuracy reasons.

    # No pad, no dtype cast of x: ragged last tiles are masked, kernel casts per-tile.
    x2d = x.reshape(-1, feat_dim)
    n = x2d.shape[0]

    # ---- VMEM-budgeted tile selection + explicit scoped-VMEM limit ----
    vmem_cap = _vmem_capacity_bytes()
    vmem_limit = int(vmem_cap * 0.9)
    tile_budget = int(vmem_cap * 0.55)
    auto_tm, auto_tn = _select_tiles(
        n, feat_dim, num_outcome,
        jnp.dtype(x2d.dtype).itemsize, jnp.dtype(w.dtype).itemsize,
        out_dtype.itemsize, tile_budget)
    tm_eff = auto_tm if tm is None else max(8, ((int(tm) + 7) // 8) * 8)
    tm_eff = min(tm_eff, ((n + 7) // 8) * 8)
    tn_eff = auto_tn if tn is None else int(tn)

    grid_i = pl.cdiv(n, tm_eff)
    grid_j = pl.cdiv(num_outcome, tn_eff)

    # v7x megacore: guarantee >= 2 blocks along a parallel axis for tiny grids.
    if grid_i == 1 and grid_j == 1 and num_outcome >= 256:
        tn_eff = ((-(-num_outcome // 2)) + 127) // 128 * 128
        grid_j = pl.cdiv(num_outcome, tn_eff)

    # Hoist cx2 across the outcome axis only when j has >1 tile AND the row axis
    # still provides parallel work for megacore splitting.
    hoist_cx2 = (grid_j > 1) and (grid_i > 1)
    dim_sem = ("parallel", "arbitrary") if hoist_cx2 else ("parallel", "parallel")

    kernel = functools.partial(_mlr_kernel, hoist_cx2=hoist_cx2, scrub_mm=scrub_mm)

    out = pl.pallas_call(
        kernel,
        out_shape=jax.ShapeDtypeStruct((n, num_outcome), out_dtype),
        grid_spec=pltpu.PrefetchScalarGridSpec(
            num_scalar_prefetch=0,
            grid=(grid_i, grid_j),
            in_specs=[
                pl.BlockSpec(memory_space=pltpu.MemorySpace.SMEM),          # c = rc*rc
                pl.BlockSpec((tm_eff, feat_dim), lambda i, j: (i, 0)),      # x rows
                pl.BlockSpec((feat_dim, tn_eff), lambda i, j: (0, j)),      # raw weight_v
                pl.BlockSpec((3, tn_eff), lambda i, j: (0, j)),             # packed scales
            ],
            out_specs=pl.BlockSpec((tm_eff, tn_eff), lambda i, j: (i, j)),
            scratch_shapes=[pltpu.VMEM((tm_eff, 1), jnp.float32)],
        ),
        compiler_params=pltpu.CompilerParams(
            dimension_semantics=dim_sem,
            vmem_limit_bytes=vmem_limit),
        interpret=interpret,
    )(c_smem, x2d, w, scales)

    return out.reshape(*orig_shape[:-1], num_outcome)


def poincare_mlr_ref(x, weight_g, weight_v, bias, c):
    """Pure-JAX reference mirroring the PyTorch code."""
    v_norm = jnp.maximum(jnp.linalg.norm(weight_v, axis=0), 1e-15)
    z_unit = weight_v / v_norm
    z_norm = weight_g
    r = bias
    rc = jnp.maximum(jnp.sqrt(jnp.asarray(c, jnp.float32)), 1e-15)
    drcr = jnp.clip(2.0 * rc * r, -20.0, 20.0)
    rcx = rc * x
    cx2 = jnp.clip(jnp.sum(rcx ** 2, axis=-1, keepdims=True), 0.0, 1.0e15)
    mm = jnp.matmul(rcx, z_unit)
    mm = jnp.where(jnp.isnan(mm) | jnp.isinf(mm), 0.0, mm)
    num = 2.0 * mm * jnp.cosh(drcr) - (1.0 + cx2) * jnp.sinh(drcr)
    den = jnp.maximum(1.0 - cx2, 1e-15)
    arg = jnp.clip(num / den, -1.0e5, 1.0e5)
    res = 2.0 * z_norm / rc * jnp.arcsinh(arg)
    return jnp.where(jnp.isnan(res) | jnp.isinf(res), 0.0, res)


if __name__ == "__main__":
    key = jax.random.PRNGKey(0)
    k_x, k_w = jax.random.split(key)

    # module config
    feat_dim = 32
    num_outcome = 128
    c = 1.0  # ball curvature

    # deterministic parameter init (mirrors __init__):
    #   weight ~ N(0, feat_dim^-0.5 / sqrt(c)),  weight_g = ||weight||_col,  bias = 0
    std = feat_dim ** (-0.5) / (c ** 0.5)
    weight = std * jax.random.normal(k_w, (feat_dim, num_outcome), jnp.float32)
    weight_g = jnp.linalg.norm(weight, axis=0)
    weight_v = weight
    bias = jnp.zeros((num_outcome,), jnp.float32)

    # small input living (approximately) inside the Poincare ball: (batch, seq, feat_dim)
    x = 0.05 * jax.random.normal(k_x, (2, 8, feat_dim), jnp.float32)

    ref = poincare_mlr_ref(x, weight_g, weight_v, bias, c)

    # exact path (f32 weights on the MXU) — tight tolerance vs. the reference
    out_f32 = jax.block_until_ready(
        poincare_mlr_pallas(x, weight_g, weight_v, bias, c, weight_dtype=jnp.float32))
    assert out_f32.shape == (2, 8, num_outcome)
    err_f32 = float(jnp.max(jnp.abs(out_f32 - ref)))
    assert jnp.allclose(out_f32, ref, atol=1e-4, rtol=1e-4), err_f32

    # default fast path (bf16 weights / bf16 MXU inputs, f32 accumulation)
    out = jax.block_until_ready(poincare_mlr_pallas(x, weight_g, weight_v, bias, c))
    assert out.shape == (2, 8, num_outcome)
    err_bf16 = float(jnp.max(jnp.abs(out - ref)))
    assert jnp.allclose(out, ref, atol=5e-3, rtol=5e-3), err_bf16

    # TODO(synk): the PyTorch module's data-dependent "print warning on NaN/Inf" branch
    # is not reproduced; the kernel always applies the equivalent scrub.
    print("KERNEL_OK")
</pallas_src>

<mosaic_0001>
module attributes {stable_mosaic.version = 11 : i64} {
  func.func @_mlr_kernel(%arg0: i32, %arg1: i32, %arg2: memref<1x1xf32, #tpu.memory_space<smem>>, %arg3: memref<16x32xf32, #tpu.memory_space<vmem>>, %arg4: memref<32x128xf32, #tpu.memory_space<vmem>>, %arg5: memref<3x128xf32, #tpu.memory_space<vmem>>, %arg6: memref<16x128xf32, #tpu.memory_space<vmem>>, %arg7: memref<16x1xf32, #tpu.memory_space<vmem>>) attributes {dimension_semantics = [#tpu.dimension_semantics<parallel>, #tpu.dimension_semantics<parallel>], iteration_bounds = array<i64: 1, 1>, scalar_prefetch = 0 : i64, scratch_operands = 1 : i64, tpu.core_type = #tpu.core_type<tc>, window_params = [{transform_indices = @transform_0, window_bounds = array<i64: 1, 1>}, {transform_indices = @transform_1, window_bounds = array<i64: 16, 32>}, {transform_indices = @transform_2, window_bounds = array<i64: 32, 128>}, {transform_indices = @transform_3, window_bounds = array<i64: 3, 128>}, {transform_indices = @transform_4, window_bounds = array<i64: 16, 128>}]} {
    %c0 = arith.constant 0 : index
    %c0_0 = arith.constant 0 : index
    %0 = memref.load %arg2[%c0, %c0_0] : memref<1x1xf32, #tpu.memory_space<smem>>
    %c0_1 = arith.constant 0 : index
    %c0_2 = arith.constant 0 : index
    %1 = vector.load %arg3[%c0_1, %c0_2] : memref<16x32xf32, #tpu.memory_space<vmem>>, vector<16x32xf32>
    %2 = arith.mulf %1, %1 : vector<16x32xf32>
    %cst = arith.constant dense<0.000000e+00> : vector<16xf32>
    %3 = vector.multi_reduction <add>, %2, %cst [1] : vector<16x32xf32> to vector<16xf32>
    %4 = vector.shape_cast %3 : vector<16xf32> to vector<16x1xf32>
    %5 = vector.broadcast %0 : f32 to vector<16x1xf32>
    %6 = arith.mulf %5, %4 : vector<16x1xf32>
    %cst_3 = arith.constant 0.000000e+00 : f32
    %cst_4 = arith.constant 9.99999986E+14 : f32
    %7 = vector.broadcast %cst_3 : f32 to vector<16x1xf32>
    %8 = arith.maximumf %7, %6 : vector<16x1xf32>
    %9 = vector.broadcast %cst_4 : f32 to vector<16x1xf32>
    %10 = arith.minimumf %9, %8 : vector<16x1xf32>
    %c0_5 = arith.constant 0 : index
    %c0_6 = arith.constant 0 : index
    %11 = vector.load %arg4[%c0_5, %c0_6] : memref<32x128xf32, #tpu.memory_space<vmem>>, vector<32x128xf32>
    %cst_7 = arith.constant dense<0.000000e+00> : vector<16x128xf32>
    %12 = tpu.matmul %1, %11, %cst_7 {dimension_numbers = #tpu.dot_dimension_numbers<[1], [0], [0], [1], [0, 0, 1, 1], [], []>} : vector<16x32xf32>, vector<32x128xf32>, vector<16x128xf32> -> vector<16x128xf32>
    %13 = math.absf %12 : vector<16x128xf32>
    %cst_8 = arith.constant 0x7F800000 : f32
    %14 = vector.broadcast %cst_8 : f32 to vector<16x128xf32>
    %15 = arith.cmpf olt, %13, %14 : vector<16x128xf32>
    %cst_9 = arith.constant 0.000000e+00 : f32
    %16 = vector.broadcast %cst_9 : f32 to vector<16x128xf32>
    %17 = arith.select %15, %12, %16 : vector<16x128xi1>, vector<16x128xf32>
    %c0_10 = arith.constant 0 : index
    %c0_11 = arith.constant 0 : index
    %18 = vector.load %arg5[%c0_10, %c0_11] : memref<3x128xf32, #tpu.memory_space<vmem>>, vector<1x128xf32>
    %c1 = arith.constant 1 : index
    %c0_12 = arith.constant 0 : index
    %19 = vector.load %arg5[%c1, %c0_12] : memref<3x128xf32, #tpu.memory_space<vmem>>, vector<1x128xf32>
    %c2 = arith.constant 2 : index
    %c0_13 = arith.constant 0 : index
    %20 = vector.load %arg5[%c2, %c0_13] : memref<3x128xf32, #tpu.memory_space<vmem>>, vector<1x128xf32>
    %21 = vector.broadcast %18 : vector<1x128xf32> to vector<16x128xf32>
    %22 = arith.mulf %17, %21 : vector<16x128xf32>
    %cst_14 = arith.constant 1.000000e+00 : f32
    %23 = vector.broadcast %cst_14 : f32 to vector<16x1xf32>
    %24 = arith.addf %23, %10 : vector<16x1xf32>
    %25 = vector.broadcast %24 : vector<16x1xf32> to vector<16x128xf32>
    %26 = vector.broadcast %19 : vector<1x128xf32> to vector<16x128xf32>
    %27 = arith.mulf %25, %26 : vector<16x128xf32>
    %28 = arith.subf %22, %27 : vector<16x128xf32>
    %cst_15 = arith.constant 1.000000e+00 : f32
    %29 = vector.broadcast %cst_15 : f32 to vector<16x1xf32>
    %30 = arith.subf %29, %10 : vector<16x1xf32>
    %cst_16 = arith.constant 1.000000e-15 : f32
    %31 = vector.broadcast %cst_16 : f32 to vector<16x1xf32>
    %32 = arith.maximumf %30, %31 : vector<16x1xf32>
    %33 = tpu.reciprocal %32 : vector<16x1xf32> -> vector<16x1xf32>
    %34 = vector.broadcast %33 : vector<16x1xf32> to vector<16x128xf32>
    %35 = arith.mulf %28, %34 : vector<16x128xf32>
    %36 = math.absf %35 : vector<16x128xf32>
    %cst_17 = arith.constant 1.000000e+05 : f32
    %37 = vector.broadcast %cst_17 : f32 to vector<16x128xf32>
    %38 = arith.minimumf %36, %37 : vector<16x128xf32>
    %39 = arith.mulf %38, %38 : vector<16x128xf32>
    %cst_18 = arith.constant 1.000000e+00 : f32
    %40 = vector.broadcast %cst_18 : f32 to vector<16x128xf32>
    %41 = arith.addf %39, %40 : vector<16x128xf32>
    %42 = math.sqrt %41 : vector<16x128xf32>
    %43 = arith.addf %38, %42 : vector<16x128xf32>
    %44 = math.log %43 : vector<16x128xf32>
    %45 = vector.broadcast %20 : vector<1x128xf32> to vector<16x128xf32>
    %46 = arith.mulf %45, %44 : vector<16x128xf32>
    %cst_19 = arith.constant 0.000000e+00 : f32
    %47 = vector.broadcast %cst_19 : f32 to vector<16x128xf32>
    %48 = arith.cmpf olt, %35, %47 : vector<16x128xf32>
    %cst_20 = arith.constant 0.000000e+00 : f32
    %49 = vector.broadcast %cst_20 : f32 to vector<16x128xf32>
    %50 = arith.subf %49, %46 : vector<16x128xf32>
    %51 = arith.select %48, %50, %46 : vector<16x128xi1>, vector<16x128xf32>
    %52 = math.absf %51 : vector<16x128xf32>
    %cst_21 = arith.constant 0x7F800000 : f32
    %53 = vector.broadcast %cst_21 : f32 to vector<16x128xf32>
    %54 = arith.cmpf olt, %52, %53 : vector<16x128xf32>
    %cst_22 = arith.constant 0.000000e+00 : f32
    %55 = vector.broadcast %cst_22 : f32 to vector<16x128xf32>
    %56 = arith.select %54, %51, %55 : vector<16x128xi1>, vector<16x128xf32>
    %c0_23 = arith.constant 0 : index
    %c0_24 = arith.constant 0 : index
    %57 = vector.load %arg6[%c0_23, %c0_24] : memref<16x128xf32, #tpu.memory_space<vmem>>, vector<16x128xf32>
    tpu.vector_store %arg6[%c0_23, %c0_24], %56 {strides = array<i32>} : memref<16x128xf32, #tpu.memory_space<vmem>>, vector<16x128xf32>,
    return
  }
  func.func @transform_0(%arg0: i32, %arg1: i32) -> (i32, i32) {
    %c0_i32 = arith.constant 0 : i32
    %c0_i32_0 = arith.constant 0 : i32
    %c0_i32_1 = arith.constant 0 : i32
    return %c0_i32, %c0_i32_0 : i32, i32
  }
  func.func @transform_1(%arg0: i32, %arg1: i32) -> (i32, i32) {
    %c0_i32 = arith.constant 0 : i32
    %c0_i32_0 = arith.constant 0 : i32
    return %arg0, %c0_i32 : i32, i32
  }
  func.func @transform_2(%arg0: i32, %arg1: i32) -> (i32, i32) {
    %c0_i32 = arith.constant 0 : i32
    %c0_i32_0 = arith.constant 0 : i32
    return %c0_i32, %arg1 : i32, i32
  }
  func.func @transform_3(%arg0: i32, %arg1: i32) -> (i32, i32) {
    %c0_i32 = arith.constant 0 : i32
    %c0_i32_0 = arith.constant 0 : i32
    return %c0_i32, %arg1 : i32, i32
  }
  func.func @transform_4(%arg0: i32, %arg1: i32) -> (i32, i32) {
    %c0_i32 = arith.constant 0 : i32
    return %arg0, %arg1 : i32, i32
  }
}

</mosaic_0001>

<llo_original>
// kernel: tpu_custom_call.1
$region0: #{tpu_custom_call.1}
  #allocation0 [shape = 'u32[]', space=smem, size = 0x4, offset = 0x4, fixed_abs, tag = 'smem constant byte address 0x4 - core index']
  #allocation1 [shape = 'u32[144,128]{1,0:T(1,128)}', space=vmem, size = 0x12000, scoped, tag = 'internal scratch']
  #allocation2 [shape = 'f32[16,1]{1,0:T(8,128)}', space=vmem, size = 0x2000, scoped, tag = 'scratch operand']
  #allocation3 [shape = 'f32[1,1]{1,0:T(1,128)S(6)}', space=smem, size = 0x200, scoped, tag = 'scoped memory for tpu_custom_call.1']
  %s0 = inlined_call_operand.<no memory space> [shape: f32[1,1], index: 0, kind: input, shape index: {}]
  %s1 = inlined_call_operand.hbm [shape: f32[16,32], index: 1, kind: input, shape index: {}]
  %s2 = inlined_call_operand.hbm [shape: f32[32,128], index: 2, kind: input, shape index: {}]
  %s3 = inlined_call_operand.vmem [shape: f32[3,128], index: 3, kind: input, shape index: {}]
  %s4 = inlined_call_operand.hbm [shape: f32[16,128], index: 4, kind: output, shape index: {}]
  %s5 = sld [smem:[#allocation0]]
  $region34: #{tpu_custom_call.1} parent=0
    _
  %s7 = ssub.s32 1, %s5
  %s8 = scalar_select 0, %s7, %s5
  %9 = sst [smem:[#allocation3]] %s0
  $region1: #{tpu_custom_call.1} parent=0
    #allocation4 [shape = 'u8[8192]{0}', space=vmem, size = 0x2000, scoped, tag = 'input window, operand 1, single buffered']
    #allocation5 [shape = 's32[1]{0}', space=sflag, size = 0x4, scoped, tag = 'scoped memory for tpu_custom_call.1']
    #allocation6 [shape = 's32[1]{0}', space=sflag, size = 0x4, scoped, tag = 'scoped memory for tpu_custom_call.1']
    #allocation7 [shape = 'u8[16384]{0}', space=vmem, size = 0x4000, scoped, tag = 'input window, operand 2, single buffered']
    #allocation8 [shape = 's32[1]{0}', space=sflag, size = 0x4, scoped, tag = 'scoped memory for tpu_custom_call.1']
    #allocation9 [shape = 'u8[8192]{0}', space=vmem, size = 0x2000, scoped, tag = 'output window, operand 0, single buffered']
    %10 = vsyncpa [#allocation5], 0
    %11 = vsyncpa [#allocation8], 0
    %12 = vsyncpa [#allocation6], 0
    // Predicated region
    $region2: #{tpu_custom_call.1} parent=1 // pred_check
      _
    $region3: #{tpu_custom_call.1} parent=1 // pred_check_branch
      %14 = sbr.rel (0) target = $region5
    $region4: #{tpu_custom_call.1} parent=1 // pred_region
      _
    $region5: #{tpu_custom_call.1} parent=1 // pred_fallthru
      _
    // Predicated region
    $region6: #{tpu_custom_call.1} parent=1 // pred_check
      _
    $region7: #{tpu_custom_call.1} parent=1 // pred_check_branch
      %16 = sbr.rel (0) target = $region9
    $region8: #{tpu_custom_call.1} parent=1 // pred_region
      %s18 = ssub.s32 256, 256
      %19 = vsyncadd [#allocation5], %s18
      %s20 = sshll.u32 [#allocation4], 4
      %s21 = int_to_ptr.vmem [resolvable:$true] %s20
      %26 = dma.hbm_to_vmem [thread:$0]  %s1, 256, %s21, [#allocation5], 128, 128, 8
    $region9: #{tpu_custom_call.1} parent=1 // pred_fallthru
      _
    // Predicated region
    $region10: #{tpu_custom_call.1} parent=1 // pred_check
      _
    $region11: #{tpu_custom_call.1} parent=1 // pred_check_branch
      %28 = sbr.rel (0) target = $region13
    $region12: #{tpu_custom_call.1} parent=1 // pred_region
      %s30 = ssub.s32 512, 512
      %31 = vsyncadd [#allocation8], %s30
      %s32 = sshll.u32 [#allocation7], 4
      %s33 = int_to_ptr.vmem [resolvable:$true] %s32
      %38 = dma.hbm_to_vmem [thread:$0]  %s2, 512, %s33, [#allocation8], 128, 128, 8
    $region13: #{tpu_custom_call.1} parent=1 // pred_fallthru
      _
    // Predicated region
    $region14: #{tpu_custom_call.1} parent=1 // pred_check
      _
    $region15: #{tpu_custom_call.1} parent=1 // pred_check_branch
      %40 = sbr.rel (0) target = $region17
    $region16: #{tpu_custom_call.1} parent=1 // pred_region
      _
    $region17: #{tpu_custom_call.1} parent=1 // pred_fallthru
      _
    // Predicated region
    $region18: #{tpu_custom_call.1} parent=1 // pred_check
      _
    $region19: #{tpu_custom_call.1} parent=1 // pred_check_branch
      %42 = sbr.rel (0) target = $region21
    $region20: #{tpu_custom_call.1} parent=1 // pred_region
      %43 = dma.done [#allocation5], 256
    $region21: #{tpu_custom_call.1} parent=1 // pred_fallthru
      _
    // Predicated region
    $region22: #{tpu_custom_call.1} parent=1 // pred_check
      _
    $region23: #{tpu_custom_call.1} parent=1 // pred_check_branch
      %45 = sbr.rel (0) target = $region25
    $region24: #{tpu_custom_call.1} parent=1 // pred_region
      %46 = dma.done [#allocation8], 512
    $region25: #{tpu_custom_call.1} parent=1 // pred_fallthru
      _
    %s47 = sld [smem:[#allocation3]]
    %v48 = vld [vmem:[#allocation4] sm:$0xff]
    %v49 = vld [vmem:[#allocation4 + $0x8] sm:$0xff]
    %v50 = vmul.f32 %v48, %v48
    %v51 = vmul.f32 %v49, %v49
    %vm52 = vcmask 261120
    %v53 = vsel %vm52, %v50, 0.0
    %54 = vadd.xlane.f32.xlu0 %v53
    %v55 = vpop.xlane.xlu0 %54
    %v56 = vsel %vm52, %v51, 0.0
    %57 = vadd.xlane.f32.xlu0 %v56
    %v58 = vpop.xlane.xlu0 %57
    %v59 = vstv %s47
    %v60 = vmul.f32 %v59, %v55
    %v61 = vmul.f32 %v59, %v58
    %v62 = vmax.f32 %v60, 0.0
    %v63 = vmax.f32 %v61, 0.0
    %v64 = vmin.f32 %v62, 1e+15
    %v65 = vmin.f32 %v63, 1e+15
    %v66 = vld [vmem:[#allocation7] sm:$0xff]
    %v67 = vld [vmem:[#allocation7 + $0x8] sm:$0xff]
    %v68 = vld [vmem:[#allocation7 + $0x10] sm:$0xff]
    %v69 = vld [vmem:[#allocation7 + $0x18] sm:$0xff]
    %v71 = vsel %vm52, %v48, 0
    %v74 = vsel %vm52, %v49, 0
    %76 = vmatprep.subr.mxu0 0.0
    %77 = vmatpush1.msra.mxu0 %v66
    %78 = vmatprep.subr.mxu0 0.0
    %79 = vmatpush1.msra.mxu0 %v67
    %80 = vmatprep.subr.mxu0 0.0
    %81 = vmatpush1.msra.mxu0 %v68
    %82 = vmatprep.subr.mxu0 0.0
    %83 = vmatpush1.msra.mxu0 %v69
    %84 = vmatprep.subr.mxu0 0.0
    %85 = vmatpush1.msra.mxu0 0.0
    %86 = vmatprep.subr.mxu0 0.0
    %87 = vmatpush1.msra.mxu0 0.0
    %88 = vmatprep.subr.mxu0 0.0
    %89 = vmatpush1.msra.mxu0 0.0
    %90 = vmatprep.subr.mxu0 0.0
    %91 = vmatpush1.msra.mxu0 0.0
    %92 = vmatprep.subr.mxu0 0.0
    %93 = vmatpush1.msra.mxu0 0.0
    %94 = vmatprep.subr.mxu0 0.0
    %95 = vmatpush1.msra.mxu0 0.0
    %96 = vmatprep.subr.mxu0 0.0
    %97 = vmatpush1.msra.mxu0 0.0
    %98 = vmatprep.subr.mxu0 0.0
    %99 = vmatpush1.msra.mxu0 0.0
    %100 = vmatprep.subr.mxu0 0.0
    %101 = vmatpush1.msra.mxu0 0.0
    %102 = vmatprep.subr.mxu0 0.0
    %103 = vmatpush1.msra.mxu0 0.0
    %104 = vmatprep.subr.mxu0 0.0
    %105 = vmatpush1.msra.mxu0 0.0
    %106 = vmatprep.subr.mxu0 0.0
    %107 = vmatpush1.msra.mxu0 0.0
    %108 = vmatprep.subr.mxu0 0.0
    %109 = vmatpush1.msra.mxu0 0.0
    %110 = vmatprep.subr.mxu0 0.0
    %111 = vmatpush1.msra.mxu0 0.0
    %112 = vmatprep.subr.mxu0 0.0
    %113 = vmatpush1.msra.mxu0 0.0
    %114 = vmatprep.subr.mxu0 0.0
    %115 = vmatpush1.msra.mxu0 0.0
    %116 = vmatprep.subr.mxu0 0.0
    %117 = vmatpush1.msra.mxu0 0.0
    %118 = vmatprep.subr.mxu0 0.0
    %119 = vmatpush1.msra.mxu0 0.0
    %120 = vmatprep.subr.mxu0 0.0
    %121 = vmatpush1.msra.mxu0 0.0
    %122 = vmatprep.subr.mxu0 0.0
    %123 = vmatpush1.msra.mxu0 0.0
    %124 = vmatprep.subr.mxu0 0.0
    %125 = vmatpush1.msra.mxu0 0.0
    %126 = vmatprep.subr.mxu0 0.0
    %127 = vmatpush1.msra.mxu0 0.0
    %128 = vmatprep.subr.mxu0 0.0
    %129 = vmatpush1.msra.mxu0 0.0
    %130 = vmatprep.subr.mxu0 0.0
    %131 = vmatpush1.msra.mxu0 0.0
    %132 = vmatprep.subr.mxu0 0.0
    %133 = vmatpush1.msra.mxu0 0.0
    %134 = vmatprep.subr.mxu0 0.0
    %135 = vmatpush1.msra.mxu0 0.0
    %136 = vmatprep.subr.mxu0 0.0
    %137 = vmatpush1.msra.mxu0 0.0
    %138 = vmatprep.subr.mxu0 0.0
    %139 = vmatpush1.msra.mxu0 0.0
    %140 = vmatprep.mubr.f32.mxu0 0.0
    %141 = vmatmul.mubr.f32.gmra.mrb[0].mxu0 %v71
    %v142 = vpop.f32.mrb[0].mxu0
    %v143 = vadd.f32 0.0, %v142
    %v144 = vpop.f32.mrb[0].mxu0
    %145 = vmatprep.mubr.f32.mxu0 0.0
    %146 = vmatmul.mubr.f32.gmra.mrb[0].mxu0 %v74
    %v147 = vpop.f32.mrb[0].mxu0
    %v148 = vadd.f32 0.0, %v147
    %v149 = vpop.f32.mrb[0].mxu0
    %150 = vdwg.mxu0
    %v151 = vand.u32 2147483647, %v143
    %v152 = vand.u32 2147483647, %v148
    %vm153 = vcmp.lt.f32.partialorder %v151, inf
    %vm154 = vcmp.lt.f32.partialorder %v152, inf
    %v155 = vsel %vm153, %v143, 0.0
    %v156 = vsel %vm154, %v148, 0.0
    %v157 = vld [vmem:[%s3] sm:$0x1]
    %v158 = vld [vmem:[%s3 + $0x1] sm:$0x1]
    %v159 = vld [vmem:[%s3 + $0x2] sm:$0x1]
    %v160 = vlaneseq
    %v161 = vshrl.u32 %v160, 7
    %v162 = vsub.s32 0, %v161
    %v163 = vrot.slane %v157, %v162
    %v164 = vmul.f32 %v155, %v163
    %v165 = vmul.f32 %v156, %v163
    %v166 = vadd.f32 %v64, 1.0
    %v167 = vadd.f32 %v65, 1.0
    %v168 = vlaneseq
    %v169 = vshrl.u32 %v168, 7
    %v170 = vsub.s32 0, %v169
    %v171 = vrot.slane %v158, %v170
    %v172 = vmul.f32 %v166, %v171
    %v173 = vmul.f32 %v167, %v171
    %v174 = vsub.f32 %v164, %v172
    %v175 = vsub.f32 %v165, %v173
    %v176 = vsub.f32 1.0, %v64
    %v177 = vsub.f32 1.0, %v65
    %v178 = vmax.f32 %v176, 1e-15
    %v179 = vmax.f32 %v177, 1e-15
    %v180 = vrcp.pop %v178
    %v181 = vrcp.pop %v179
    %v182 = vmul.f32 %v174, %v180
    %v183 = vmul.f32 %v175, %v181
    %v184 = vand.u32 2147483647, %v182
    %v185 = vand.u32 2147483647, %v183
    %v186 = vmin.f32 %v184, 100000.0
    %v187 = vmin.f32 %v185, 100000.0
    %v188 = vmul.f32 %v186, %v186
    %v189 = vmul.f32 %v187, %v187
    %v190 = vadd.f32 %v188, 1.0
    %v191 = vadd.f32 %v189, 1.0
    %v192 = vrsqrt.pop %v190
    %v193 = vmul.f32 %v190, %v192
    %vm194 = vcmp.eq.f32.partialorder %v190, inf
    %v195 = vsel %vm194, %v190, %v193
    %vm196 = vcmp.eq.f32.partialorder %v190, 0.0
    %v197 = vand.u32 %v190, 2147483648
    %v198 = vsel %vm196, %v197, %v195
    %v199 = vrsqrt.pop %v191
    %v200 = vmul.f32 %v191, %v199
    %vm201 = vcmp.eq.f32.partialorder %v191, inf
    %v202 = vsel %vm201, %v191, %v200
    %vm203 = vcmp.eq.f32.partialorder %v191, 0.0
    %v204 = vand.u32 %v191, 2147483648
    %v205 = vsel %vm203, %v204, %v202
    %v206 = vadd.f32 %v186, %v198
    %v207 = vadd.f32 %v187, %v205
    %v208 = vlog2.pop %v206
    %v209 = vmul.f32 %v208, 0.6931472
    %v210 = vlog2.pop %v207
    %v211 = vmul.f32 %v210, 0.6931472
    %v212 = vlaneseq
    %v213 = vshrl.u32 %v212, 7
    %v214 = vsub.s32 0, %v213
    %v215 = vrot.slane %v159, %v214
    %v216 = vmul.f32 %v215, %v209
    %v217 = vmul.f32 %v215, %v211
    %vm218 = vcmp.lt.f32.partialorder %v182, 0.0
    %vm219 = vcmp.lt.f32.partialorder %v183, 0.0
    %v220 = vsub.f32 0.0, %v216
    %v221 = vsub.f32 0.0, %v217
    %v222 = vsel %vm218, %v220, %v216
    %v223 = vsel %vm219, %v221, %v217
    %v224 = vand.u32 2147483647, %v222
    %v225 = vand.u32 2147483647, %v223
    %vm226 = vcmp.lt.f32.partialorder %v224, inf
    %vm227 = vcmp.lt.f32.partialorder %v225, inf
    %v228 = vsel %vm226, %v222, 0.0
    %v229 = vsel %vm227, %v223, 0.0
    %230 = vst [vmem:[#allocation9] sm:$0xff] %v228
    %231 = vst [vmem:[#allocation9 + $0x8] sm:$0xff] %v229
    // Predicated region
    $region26: #{tpu_custom_call.1} parent=1 // pred_check
      _
    $region27: #{tpu_custom_call.1} parent=1 // pred_check_branch
      %233 = sbr.rel (0) target = $region29
    $region28: #{tpu_custom_call.1} parent=1 // pred_region
      %s235 = ssub.s32 256, 256
      %236 = vsyncadd [#allocation6], %s235
      %s237 = sshll.u32 [#allocation9], 4
      %s238 = int_to_ptr.vmem [resolvable:$true] %s237
      %243 = dma.vmem_to_hbm [thread:$0]  %s238, 256, %s4, [#allocation6], 128, 128, 8
    $region29: #{tpu_custom_call.1} parent=1 // pred_fallthru
      _
    // Predicated region
    $region30: #{tpu_custom_call.1} parent=1 // pred_check
      _
    $region31: #{tpu_custom_call.1} parent=1 // pred_check_branch
      %245 = sbr.rel (0) target = $region33
    $region32: #{tpu_custom_call.1} parent=1 // pred_region
      %246 = dma.done [#allocation6], 256
    $region33: #{tpu_custom_call.1} parent=1 // pred_fallthru
      _
    %247 = vsyncpa [#allocation5], 1
    %248 = vsyncpa [#allocation8], 1
    %249 = vsyncpa [#allocation6], 1

</llo_original>
